<compile_context>
chip_gen: v7x
topology: tpu7x:2x2x1
jax: 0.10.0
libtpu: 0.0.40
codegen_flags: <defaults>
</compile_context>

<pallas_src>
import functools
import math

import jax
import jax.numpy as jnp
from jax.experimental import pallas as pl
from jax.experimental.pallas import tpu as pltpu

VMEM_LIMIT_BYTES = 32 * 1024 * 1024     # safe on v5e / v6e / v7x (v7x has only 64 MiB physical)


# --------------------------------------------------------------------------- #
# small helpers
# --------------------------------------------------------------------------- #
def _round_up(x, m):
    return ((x + m - 1) // m) * m


def _lane_pad(n):
    return _round_up(max(n, 1), 128)


def _pad_rows(x, rows):
    pad = rows - x.shape[0]
    if pad == 0:
        return x
    return jnp.pad(x, ((0, pad),) + ((0, 0),) * (x.ndim - 1))


def _pick_rows(n_rows, target, row_bytes=0, budget=8 * 1024 * 1024):
    """Point-tile size: multiple of 8, VMEM-budgeted, never larger than needed."""
    p = target
    if row_bytes:
        p = min(p, max(8, budget // max(row_bytes, 1)))
    p = min(p, _round_up(max(n_rows, 8), 8))
    return max(8, (p // 8) * 8)


def _compiler_params():
    return pltpu.CompilerParams(dimension_semantics=("parallel",),
                                vmem_limit_bytes=VMEM_LIMIT_BYTES)


# --------------------------------------------------------------------------- #
# JAX glue: knn / gather / farthest point sampling / batchnorm
# --------------------------------------------------------------------------- #
def knn_point(k, xyz_src, xyz_query):
    """Indices + (squared) distances of the k nearest src points of every query point."""
    # TODO(synk): O(Nq*Ns) pairwise distances; chunk (or move to a tiled Pallas top-k) for
    #             very large clouds.  Fine at demo sizes.
    sq_s = jnp.sum(xyz_src * xyz_src, axis=-1)
    sq_q = jnp.sum(xyz_query * xyz_query, axis=-1)
    inner = jnp.einsum("bqd,bsd->bqs", xyz_query, xyz_src)
    d2 = sq_q[:, :, None] + sq_s[:, None, :] - 2.0 * inner
    neg, idx = jax.lax.top_k(-d2, k)
    return idx, -neg


def index_points(points, idx):
    return jax.vmap(lambda p, i: p[i])(points, idx)


def farthest_point_sample(xyz, npoint):
    # TODO(synk): deterministic start at index 0 (torch starts at a random point).
    B, N, _ = xyz.shape

    def body(i, state):
        idx, dist, far = state
        idx = idx.at[:, i].set(far)
        centroid = jnp.take_along_axis(xyz, far[:, None, None], axis=1)     # (B, 1, 3)
        d = jnp.sum((xyz - centroid) ** 2, axis=-1)
        dist = jnp.minimum(dist, d)
        far = jnp.argmax(dist, axis=-1).astype(jnp.int32)
        return idx, dist, far

    init = (jnp.zeros((B, npoint), jnp.int32),
            jnp.full((B, N), 1e10, jnp.float32),
            jnp.zeros((B,), jnp.int32))
    idx, _, _ = jax.lax.fori_loop(0, npoint, body, init)
    return idx


def batchnorm1d(x, eps=1e-5):
    # TODO(synk): training-mode batch statistics with default gamma=1 / beta=0; a cheap
    #             whole-array reduction, kept in JAX rather than Pallas.
    mean = jnp.mean(x, axis=(0, 1), keepdims=True)
    var = jnp.mean((x - mean) ** 2, axis=(0, 1), keepdims=True)
    return (x - mean) * jax.lax.rsqrt(var + eps)


# --------------------------------------------------------------------------- #
# Pallas kernels
# --------------------------------------------------------------------------- #
def _linear_kernel(x_ref, w_ref, b_ref, o_ref, *, relu):
    y = jnp.dot(x_ref[...], w_ref[...], preferred_element_type=jnp.float32) + b_ref[...]
    if relu:
        y = jnp.maximum(y, 0.0)
    o_ref[...] = y


def _mlp2_kernel(x_ref, w1_ref, b1_ref, w2_ref, b2_ref, o_ref):
    h = jnp.dot(x_ref[...], w1_ref[...], preferred_element_type=jnp.float32) + b1_ref[...]
    h = jnp.maximum(h, 0.0)
    o_ref[...] = jnp.dot(h, w2_ref[...], preferred_element_type=jnp.float32) + b2_ref[...]


def _transformer_core_kernel(gw_ref, gf_ref, wr_ref, br_ref, ws_ref, bs_ref, o_ref):
    # gw_ref : (P*K, Cgw)   concatenated [neighbour - centre, centre] rows
    # gf_ref : (P*K, D)     gathered relu(linear_v) features
    # wr_ref : (Cgw, D*D)   linear_r          br_ref : (1, D*D)
    # ws_ref : (D, D)       suffix_linear     bs_ref : (1, D)
    # o_ref  : (P, D)
    P, D = o_ref.shape
    PK = gw_ref.shape[0]
    K = PK // P
    D2 = D * D

    # linear_r on every (point, neighbour) row: one lane-dense MXU pass.
    a = jnp.dot(gw_ref[...], wr_ref[...], preferred_element_type=jnp.float32) + br_ref[...]

    # Structured 0/1 matrices (lane j = e*D + d of the per-neighbour (D, D) weight block).
    j_i = jax.lax.broadcasted_iota(jnp.int32, (D2, D), 0)
    c_i = jax.lax.broadcasted_iota(jnp.int32, (D2, D), 1)
    m_sum = jnp.where(j_i // D == c_i, 1.0, 0.0)        # group lanes by e (sum over d)
    m_red = jnp.where(j_i % D == c_i, 1.0, 0.0)         # group lanes by d (sum over e)
    e_i = jax.lax.broadcasted_iota(jnp.int32, (D, D2), 0)
    l_i = jax.lax.broadcasted_iota(jnp.int32, (D, D2), 1)
    m_exp = jnp.where(l_i // D == e_i, 1.0, 0.0)        # broadcast length-D row into D*D lanes

    # torch: weight / (|weight| + 1e-7).sum(-1, keepdim=True) * sqrt(D), folded into the
    # gathered feature:  gs[r, e] = gf[r, e] * sqrt(D) / (sum_d |a[r, e*D+d]| + D*1e-7)
    s = jnp.dot(jnp.abs(a), m_sum, preferred_element_type=jnp.float32) + D * 1e-7
    gs = gf_ref[...] * (math.sqrt(D) / s)

    # out_rows[r, d] = sum_e gs[r, e] * a[r, e*D + d]
    c = jnp.dot(gs, m_exp, preferred_element_type=jnp.float32) * a
    rows = jnp.dot(c, m_red, preferred_element_type=jnp.float32)            # (P*K, D)

    # segment-sum of the K neighbour rows of every point (one more small MXU op instead of
    # a (P, K, D) relayout)
    p_i = jax.lax.broadcasted_iota(jnp.int32, (P, PK), 0)
    r_i = jax.lax.broadcasted_iota(jnp.int32, (P, PK), 1)
    seg = jnp.where(r_i // K == p_i, 1.0, 0.0)
    agg = jnp.dot(seg, rows, preferred_element_type=jnp.float32)            # (P, D)

    # suffix_linear
    o_ref[...] = jnp.dot(agg, ws_ref[...], preferred_element_type=jnp.float32) + bs_ref[...]


def _indicator_core_kernel(gxyz_ref, gf_ref, w1_ref, b1_ref, w2_ref, b2_ref, o_ref):
    # gxyz_ref : (P*K, 3)   neighbour xyz relative to the query point
    # gf_ref   : (P*K, D)   gathered prefix_linear features
    # fc_position: Linear(3, D) -> ReLU -> Linear(D, D); output reduced over K per channel.
    P, D = o_ref.shape
    PK = gxyz_ref.shape[0]
    K = PK // P
    h = jnp.dot(gxyz_ref[...], w1_ref[...], preferred_element_type=jnp.float32) + b1_ref[...]
    h = jnp.maximum(h, 0.0)
    pos = jnp.dot(h, w2_ref[...], preferred_element_type=jnp.float32) + b2_ref[...]
    prod = pos * gf_ref[...]
    p_i = jax.lax.broadcasted_iota(jnp.int32, (P, PK), 0)
    r_i = jax.lax.broadcasted_iota(jnp.int32, (P, PK), 1)
    seg = jnp.where(r_i // K == p_i, 1.0, 0.0)
    o_ref[...] = jnp.dot(seg, prod, preferred_element_type=jnp.float32) * (1.0 / math.sqrt(K))


# --------------------------------------------------------------------------- #
# pallas_call wrappers (row-tiled, weights resident via constant index maps)
# --------------------------------------------------------------------------- #
def pallas_linear(x2d, w, b, relu=False, target_rows=512):
    rows, cin = x2d.shape
    dout = w.shape[1]
    row_bytes = 4 * (2 * _lane_pad(cin) + 2 * _lane_pad(dout))
    P = _pick_rows(rows, target_rows, row_bytes)
    rows_p = _round_up(rows, P)
    out = pl.pallas_call(
        functools.partial(_linear_kernel, relu=relu),
        grid=(rows_p // P,),
        in_specs=[pl.BlockSpec((P, cin), lambda i: (i, 0)),
                  pl.BlockSpec((cin, dout), lambda i: (0, 0)),
                  pl.BlockSpec((1, dout), lambda i: (0, 0))],
        out_specs=pl.BlockSpec((P, dout), lambda i: (i, 0)),
        out_shape=jax.ShapeDtypeStruct((rows_p, dout), jnp.float32),
        compiler_params=_compiler_params(),
    )(_pad_rows(x2d, rows_p), w, b)
    return out[:rows]


def pallas_mlp2(x2d, w1, b1, w2, b2, target_rows=512):
    rows, cin = x2d.shape
    hid, dout = w1.shape[1], w2.shape[1]
    row_bytes = 4 * (2 * _lane_pad(cin) + _lane_pad(hid) + 2 * _lane_pad(dout))
    P = _pick_rows(rows, target_rows, row_bytes)
    rows_p = _round_up(rows, P)
    out = pl.pallas_call(
        _mlp2_kernel,
        grid=(rows_p // P,),
        in_specs=[pl.BlockSpec((P, cin), lambda i: (i, 0)),
                  pl.BlockSpec((cin, hid), lambda i: (0, 0)),
                  pl.BlockSpec((1, hid), lambda i: (0, 0)),
                  pl.BlockSpec((hid, dout), lambda i: (0, 0)),
                  pl.BlockSpec((1, dout), lambda i: (0, 0))],
        out_specs=pl.BlockSpec((P, dout), lambda i: (i, 0)),
        out_shape=jax.ShapeDtypeStruct((rows_p, dout), jnp.float32),
        compiler_params=_compiler_params(),
    )(_pad_rows(x2d, rows_p), w1, b1, w2, b2)
    return out[:rows]


# --------------------------------------------------------------------------- #
# layers (Pallas path)
# --------------------------------------------------------------------------- #
def transformer_layer_fwd(p, feature, xyz, knn_num=36):
    B, N, _ = feature.shape
    K = knn_num
    D = p["ws"].shape[0]
    cgw = p["wr"].shape[0]

    idx, _ = knn_point(K, xyz, xyz)
    pre = jnp.concatenate([feature, xyz], axis=-1)                           # (B, N, Cin+3)
    g = index_points(pre, idx)                                               # (B, N, K, Cin+3)
    gw = jnp.concatenate([g - pre[:, :, None, :],
                          jnp.broadcast_to(pre[:, :, None, :], g.shape)], axis=-1)

    v = pallas_linear(pre.reshape(B * N, -1), p["wv"], p["bv"], relu=True)   # linear_v + relu
    gf = index_points(v.reshape(B, N, D), idx)                               # (B, N, K, D)
    # TODO(synk): the neighbour gathers could be fused into the core kernel with a
    #             scalar-prefetched index table + per-tile DMA gather to skip the HBM round trip.

    BN = B * N
    row_bytes = 4 * K * (3 * _lane_pad(cgw) + 2 * _lane_pad(D * D) + 5 * _lane_pad(D))
    P = _pick_rows(BN, 64, row_bytes)
    BNp = _round_up(BN, P)

    out = pl.pallas_call(
        _transformer_core_kernel,
        grid=(BNp // P,),
        in_specs=[pl.BlockSpec((P * K, cgw), lambda i: (i, 0)),
                  pl.BlockSpec((P * K, D), lambda i: (i, 0)),
                  pl.BlockSpec((cgw, D * D), lambda i: (0, 0)),
                  pl.BlockSpec((1, D * D), lambda i: (0, 0)),
                  pl.BlockSpec((D, D), lambda i: (0, 0)),
                  pl.BlockSpec((1, D), lambda i: (0, 0))],
        out_specs=pl.BlockSpec((P, D), lambda i: (i, 0)),
        out_shape=jax.ShapeDtypeStruct((BNp, D), jnp.float32),
        compiler_params=_compiler_params(),
    )(_pad_rows(gw.reshape(BN * K, cgw), BNp * K),
      _pad_rows(gf.reshape(BN * K, D), BNp * K),
      p["wr"], p["br"], p["ws"], p["bs"])
    return out[:BN].reshape(B, N, D), N


def indicator_layer_fwd(p, feature1, xyz1, xyz2, knn_num=16):
    B, N1, _ = feature1.shape
    M = xyz2.shape[1]
    K = knn_num
    D = p["wp"].shape[1]

    feat = pallas_linear(feature1.reshape(B * N1, -1), p["wp"], p["bp"]).reshape(B, N1, D)

    idx, dist = knn_point(K, xyz1, xyz2)
    weight = jnp.where(dist[:, :, 0] > 0.03, 10.0, 1.0)                      # min-distance gate

    gf = index_points(feat, idx)                                             # (B, M, K, D)
    gxyz = index_points(xyz1, idx) - xyz2[:, :, None, :]                     # (B, M, K, 3)

    BM = B * M
    row_bytes = 4 * K * (2 * _lane_pad(3) + 6 * _lane_pad(D))
    P = _pick_rows(BM, 128, row_bytes)
    BMp = _round_up(BM, P)

    out = pl.pallas_call(
        _indicator_core_kernel,
        grid=(BMp // P,),
        in_specs=[pl.BlockSpec((P * K, 3), lambda i: (i, 0)),
                  pl.BlockSpec((P * K, D), lambda i: (i, 0)),
                  pl.BlockSpec((3, D), lambda i: (0, 0)),
                  pl.BlockSpec((1, D), lambda i: (0, 0)),
                  pl.BlockSpec((D, D), lambda i: (0, 0)),
                  pl.BlockSpec((1, D), lambda i: (0, 0))],
        out_specs=pl.BlockSpec((P, D), lambda i: (i, 0)),
        out_shape=jax.ShapeDtypeStruct((BMp, D), jnp.float32),
        compiler_params=_compiler_params(),
    )(_pad_rows(gxyz.reshape(BM * K, 3), BMp * K),
      _pad_rows(gf.reshape(BM * K, D), BMp * K),
      p["w1"], p["b1"], p["w2"], p["b2"])
    return out[:BM].reshape(B, M, D), weight


def seg_decoder_fwd(params, xyz, detect_point):
    B, N, _ = xyz.shape
    f1 = batchnorm1d(transformer_layer_fwd(params["tl1"], xyz, xyz, knn_num=36)[0])
    f2 = batchnorm1d(transformer_layer_fwd(params["tl2"], f1, xyz, knn_num=36)[0])
    f3 = batchnorm1d(transformer_layer_fwd(params["tl3"], f2, xyz, knn_num=36)[0])

    npoint = min(512, N)       # torch hard-codes 512; clamp so tiny demos still run
    far_idx = farthest_point_sample(xyz, npoint)
    f3_down = index_points(f3, far_idx)
    xyz_down = index_points(xyz, far_idx)

    f4 = batchnorm1d(transformer_layer_fwd(params["tl4"], f3_down, xyz_down, knn_num=36)[0])
    f4_up, _ = indicator_layer_fwd(params["int5"], f4, xyz_down, xyz, knn_num=12)
    f5 = batchnorm1d(transformer_layer_fwd(params["tl5"], f4_up, xyz, knn_num=36)[0])

    feat = jnp.concatenate([f3, f5], axis=-1)
    nf3, weight = indicator_layer_fwd(params["ind3"], feat, xyz, detect_point, knn_num=12)

    B_, M, C = nf3.shape
    occ = pallas_mlp2(nf3.reshape(B_ * M, C), params["cls_w1"], params["cls_b1"],
                      params["cls_w2"], params["cls_b2"]).reshape(B_, M, 2)
    # torch returns `occ` as a length-B list of (M, 2) logits; we return the stacked array.
    return occ, weight


# --------------------------------------------------------------------------- #
# pure-JAX reference (mirrors the PyTorch forward) for a correctness check
# --------------------------------------------------------------------------- #
def transformer_layer_ref(p, feature, xyz, knn_num=36):
    B, N, _ = feature.shape
    K = knn_num
    D = p["ws"].shape[0]
    idx, _ = knn_point(K, xyz, xyz)
    pre = jnp.concatenate([feature, xyz], axis=-1)
    g = index_points(pre, idx)
    gw = jnp.concatenate([g - pre[:, :, None, :],
                          jnp.broadcast_to(pre[:, :, None, :], g.shape)], axis=-1)
    w = (gw @ p["wr"] + p["br"]).reshape(B, N, K * D, D)
    w = w / (jnp.abs(w) + 1e-7).sum(-1, keepdims=True) * math.sqrt(D)
    v = jnp.maximum(pre @ p["wv"] + p["bv"], 0.0)
    gf = index_points(v, idx)
    out = jnp.matmul(gf.reshape(B, N, 1, K * D), w).reshape(B, N, D)
    return out @ p["ws"] + p["bs"], N


def indicator_layer_ref(p, feature1, xyz1, xyz2, knn_num=16):
    K = knn_num
    feat = feature1 @ p["wp"] + p["bp"]
    idx, dist = knn_point(K, xyz1, xyz2)
    weight = jnp.where(dist[:, :, 0] > 0.03, 10.0, 1.0)
    gf = index_points(feat, idx)
    gxyz = index_points(xyz1, idx) - xyz2[:, :, None, :]
    pos = jnp.maximum(gxyz @ p["w1"] + p["b1"], 0.0) @ p["w2"] + p["b2"]
    nf = jnp.sum(pos * gf, axis=2) / math.sqrt(K)
    return nf, weight


def seg_decoder_ref(params, xyz, detect_point):
    B, N, _ = xyz.shape
    f1 = batchnorm1d(transformer_layer_ref(params["tl1"], xyz, xyz)[0])
    f2 = batchnorm1d(transformer_layer_ref(params["tl2"], f1, xyz)[0])
    f3 = batchnorm1d(transformer_layer_ref(params["tl3"], f2, xyz)[0])
    far_idx = farthest_point_sample(xyz, min(512, N))
    f3_down = index_points(f3, far_idx)
    xyz_down = index_points(xyz, far_idx)
    f4 = batchnorm1d(transformer_layer_ref(params["tl4"], f3_down, xyz_down)[0])
    f4_up, _ = indicator_layer_ref(params["int5"], f4, xyz_down, xyz, knn_num=12)
    f5 = batchnorm1d(transformer_layer_ref(params["tl5"], f4_up, xyz)[0])
    feat = jnp.concatenate([f3, f5], axis=-1)
    nf3, weight = indicator_layer_ref(params["ind3"], feat, xyz, detect_point, knn_num=12)
    h = jnp.maximum(nf3 @ params["cls_w1"] + params["cls_b1"], 0.0)
    occ = h @ params["cls_w2"] + params["cls_b2"]
    return occ, weight


# --------------------------------------------------------------------------- #
# parameter init (torch nn.Linear default init; weights stored as (in, out))
# --------------------------------------------------------------------------- #
def _lin_init(key, fan_in, shape):
    return jax.random.uniform(key, shape, jnp.float32, -1.0, 1.0) / math.sqrt(float(fan_in))


def init_transformer_params(key, input_dim, out_dim):
    D = out_dim
    ci = input_dim + 3
    cgw = 2 * ci
    ks = jax.random.split(key, 6)
    return {"wr": _lin_init(ks[0], cgw, (cgw, D * D)), "br": _lin_init(ks[1], cgw, (1, D * D)),
            "wv": _lin_init(ks[2], ci, (ci, D)),       "bv": _lin_init(ks[3], ci, (1, D)),
            "ws": _lin_init(ks[4], D, (D, D)),         "bs": _lin_init(ks[5], D, (1, D))}


def init_indicator_params(key, input_dim, out_dim):
    D = out_dim
    ks = jax.random.split(key, 6)
    return {"wp": _lin_init(ks[0], input_dim, (input_dim, D)),
            "bp": _lin_init(ks[1], input_dim, (1, D)),
            "w1": _lin_init(ks[2], 3, (3, D)), "b1": _lin_init(ks[3], 3, (1, D)),
            "w2": _lin_init(ks[4], D, (D, D)), "b2": _lin_init(ks[5], D, (1, D))}


def init_seg_decoder_params(key, ef_dim):
    ks = jax.random.split(key, 11)
    return {
        "tl1": init_transformer_params(ks[0], 3, ef_dim // 4),
        "tl2": init_transformer_params(ks[1], ef_dim // 4, ef_dim),
        "tl3": init_transformer_params(ks[2], ef_dim, ef_dim),
        "tl4": init_transformer_params(ks[3], ef_dim, ef_dim),
        "tl5": init_transformer_params(ks[4], ef_dim, ef_dim),
        "int5": init_indicator_params(ks[5], ef_dim, ef_dim),
        "ind3": init_indicator_params(ks[6], ef_dim * 2, ef_dim * 4),
        "cls_w1": _lin_init(ks[7], ef_dim * 4, (ef_dim * 4, ef_dim // 4)),
        "cls_b1": _lin_init(ks[8], ef_dim * 4, (1, ef_dim // 4)),
        "cls_w2": _lin_init(ks[9], ef_dim // 4, (ef_dim // 4, 2)),
        "cls_b2": _lin_init(ks[10], ef_dim // 4, (1, 2)),
    }


if __name__ == "__main__":
    # N > 512 so the hard-coded FPS(512) down-sampling stage is actually exercised.
    B, N, M, EF = 2, 560, 192, 16
    key = jax.random.PRNGKey(0)
    kx, kd, kp = jax.random.split(key, 3)
    xyz = jax.random.normal(kx, (B, N, 3), dtype=jnp.float32)
    detect_point = jax.random.normal(kd, (B, M, 3), dtype=jnp.float32)
    params = init_seg_decoder_params(kp, EF)

    occ, weight = seg_decoder_fwd(params, xyz, detect_point)
    occ, weight = jax.block_until_ready((occ, weight))

    occ_ref, weight_ref = seg_decoder_ref(params, xyz, detect_point)
    assert occ.shape == (B, M, 2) and weight.shape == (B, M)
    assert jnp.allclose(weight, weight_ref), "min-distance weight mismatch"
    assert jnp.allclose(occ, occ_ref, rtol=2e-2, atol=2e-2), (
        "occ mismatch, max abs err = %f" % float(jnp.max(jnp.abs(occ - occ_ref))))

    print("KERNEL_OK")
</pallas_src>

<mosaic_0001>
module attributes {stable_mosaic.version = 11 : i64} {
  func.func @_linear_kernel(%arg0: i32, %arg1: memref<512x6xf32, #tpu.memory_space<vmem>>, %arg2: memref<6x4xf32, #tpu.memory_space<vmem>>, %arg3: memref<1x4xf32, #tpu.memory_space<vmem>>, %arg4: memref<512x4xf32, #tpu.memory_space<vmem>>) attributes {dimension_semantics = [#tpu.dimension_semantics<parallel>], iteration_bounds = array<i64: 3>, scalar_prefetch = 0 : i64, scratch_operands = 0 : i64, tpu.core_type = #tpu.core_type<tc>, window_params = [{transform_indices = @transform_0, window_bounds = array<i64: 512, 6>}, {pipeline_mode = #tpu.pipeline_mode<synchronous>, transform_indices = @transform_1, window_bounds = array<i64: 6, 4>}, {pipeline_mode = #tpu.pipeline_mode<synchronous>, transform_indices = @transform_2, window_bounds = array<i64: 1, 4>}, {transform_indices = @transform_3, window_bounds = array<i64: 512, 4>}]} {
    %c0 = arith.constant 0 : index
    %c0_0 = arith.constant 0 : index
    %0 = vector.load %arg1[%c0, %c0_0] : memref<512x6xf32, #tpu.memory_space<vmem>>, vector<512x6xf32>
    %c0_1 = arith.constant 0 : index
    %c0_2 = arith.constant 0 : index
    %1 = vector.load %arg2[%c0_1, %c0_2] : memref<6x4xf32, #tpu.memory_space<vmem>>, vector<6x4xf32>
    %cst = arith.constant dense<0.000000e+00> : vector<512x4xf32>
    %2 = tpu.matmul %0, %1, %cst {dimension_numbers = #tpu.dot_dimension_numbers<[1], [0], [0], [1], [0, 0, 1, 1], [], []>} : vector<512x6xf32>, vector<6x4xf32>, vector<512x4xf32> -> vector<512x4xf32>
    %c0_3 = arith.constant 0 : index
    %c0_4 = arith.constant 0 : index
    %3 = vector.load %arg3[%c0_3, %c0_4] : memref<1x4xf32, #tpu.memory_space<vmem>>, vector<1x4xf32>
    %4 = vector.broadcast %3 : vector<1x4xf32> to vector<512x4xf32>
    %5 = arith.addf %2, %4 : vector<512x4xf32>
    %cst_5 = arith.constant 0.000000e+00 : f32
    %6 = vector.broadcast %cst_5 : f32 to vector<512x4xf32>
    %7 = arith.maximumf %5, %6 : vector<512x4xf32>
    %c0_6 = arith.constant 0 : index
    %c0_7 = arith.constant 0 : index
    %8 = vector.load %arg4[%c0_6, %c0_7] : memref<512x4xf32, #tpu.memory_space<vmem>>, vector<512x4xf32>
    tpu.vector_store %arg4[%c0_6, %c0_7], %7 {strides = array<i32>} : memref<512x4xf32, #tpu.memory_space<vmem>>, vector<512x4xf32>,
    return
  }
  func.func @transform_0(%arg0: i32) -> (i32, i32) {
    %c0_i32 = arith.constant 0 : i32
    %c0_i32_0 = arith.constant 0 : i32
    return %arg0, %c0_i32 : i32, i32
  }
  func.func @transform_1(%arg0: i32) -> (i32, i32) {
    %c0_i32 = arith.constant 0 : i32
    %c0_i32_0 = arith.constant 0 : i32
    %c0_i32_1 = arith.constant 0 : i32
    return %c0_i32, %c0_i32_0 : i32, i32
  }
  func.func @transform_2(%arg0: i32) -> (i32, i32) {
    %c0_i32 = arith.constant 0 : i32
    %c0_i32_0 = arith.constant 0 : i32
    %c0_i32_1 = arith.constant 0 : i32
    return %c0_i32, %c0_i32_0 : i32, i32
  }
  func.func @transform_3(%arg0: i32) -> (i32, i32) {
    %c0_i32 = arith.constant 0 : i32
    %c0_i32_0 = arith.constant 0 : i32
    return %arg0, %c0_i32 : i32, i32
  }
}

</mosaic_0001>

<llo_original>
// kernel: tpu_custom_call.1
$region0: #{tpu_custom_call.1}
  #allocation0 [shape = 'u32[]', space=smem, size = 0x4, offset = 0x4, fixed_abs, tag = 'smem constant byte address 0x4 - core index']
  #allocation1 [shape = 'u32[144,128]{1,0:T(1,128)}', space=vmem, size = 0x12000, scoped, tag = 'internal scratch']
  %s0 = inlined_call_operand.vmem [shape: f32[1536,6], index: 0, kind: input, shape index: {}]
  %s1 = inlined_call_operand.vmem [shape: f32[6,4], index: 1, kind: input, shape index: {}]
  %s2 = inlined_call_operand.vmem [shape: f32[1,4], index: 2, kind: input, shape index: {}]
  %s3 = inlined_call_operand.vmem [shape: f32[1536,4], index: 3, kind: output, shape index: {}]
  %s4 = sld [smem:[#allocation0]]
  $region45: #{tpu_custom_call.1} parent=0
    _
  %s6 = ssub.s32 1, %s4
  %s7 = scalar_select 0, %s6, %s4
  loop: start=0, step=1, limit=5
  $region2: #{tpu_custom_call.1} parent=0 // loop_pre_header
    _
  $region3: #{tpu_custom_call.1} parent=0 // loop_header
    %s9 = sphi 0, %s13
    %p10 = scmp.ge.s32.totalorder %s9, 5
    %s19 = sphi 0, %s21
    %s22 = sphi 0, %s19
    %s23 = sphi 0, %s22
    %s39 = sphi 0, %s23
    %s43 = sphi 0, %s43
    %s45 = sphi 0, %s43
    %s46 = sphi 0, %s45
    %s60 = sphi 0, %s46
    %s64 = sphi 0, %s64
    %s66 = sphi 0, %s64
    %s67 = sphi 0, %s66
    %s81 = sphi 0, %s67
    %s87 = sphi 0, %s89
    %s90 = sphi 0, %s87
    %s91 = sphi 0, %s90
    %s107 = sphi 0, %s91
  $region4: #{tpu_custom_call.1} parent=0 // loop_header_branch
    %12 = sbr.rel (%p10) target = $region8
  $region5: #{tpu_custom_call.1} parent=0 // loop_body
    %s14 = ssub.s32 %s9, 1
    %s15 = ssub.s32 %s9, 2
    %s16 = sadd.s32 %s9, 1
    %s17 = ssub.s32 %s9, %s16
    %p18 = scmp.eq.s32.totalorder %s17, 0
    %s20 = sadd.s32 %s19, 1
    %s21 = scalar_select %p18, %s19, %s20
    %p24 = pneg %p18
    %p25 = scmp.eq.s32.totalorder %s9, 2
    %p26 = por %p24, %p25
    %p27 = scmp.ne.s32.totalorder %s19, %s22
    %p28 = scmp.eq.s32.totalorder %s9, 0
    %p29 = por %p27, %p28
    %p30 = scmp.ne.s32.totalorder %s19, %s22
    %p31 = scmp.eq.s32.totalorder %s14, 2
    %p32 = por %p30, %p31
    %p33 = scmp.ne.s32.totalorder %s22, %s23
    %p34 = scmp.eq.s32.totalorder %s14, 0
    %p35 = por %p33, %p34
    %p36 = scmp.ne.s32.totalorder %s22, %s23
    %p37 = scmp.eq.s32.totalorder %s15, 2
    %p38 = por %p36, %p37
    %p40 = scmp.ne.s32.totalorder %s23, %s39
    %p41 = scmp.eq.s32.totalorder %s15, 0
    %p42 = por %p40, %p41
    %s44 = sadd.s32 %s43, 1
    %p47 = scmp.eq.s32.totalorder %s9, 2
    %p48 = scmp.ne.s32.totalorder %s43, %s45
    %p49 = scmp.eq.s32.totalorder %s9, 0
    %p50 = por %p48, %p49
    %p51 = scmp.ne.s32.totalorder %s43, %s45
    %p52 = scmp.eq.s32.totalorder %s14, 2
    %p53 = por %p51, %p52
    %p54 = scmp.ne.s32.totalorder %s45, %s46
    %p55 = scmp.eq.s32.totalorder %s14, 0
    %p56 = por %p54, %p55
    %p57 = scmp.ne.s32.totalorder %s45, %s46
    %p58 = scmp.eq.s32.totalorder %s15, 2
    %p59 = por %p57, %p58
    %p61 = scmp.ne.s32.totalorder %s46, %s60
    %p62 = scmp.eq.s32.totalorder %s15, 0
    %p63 = por %p61, %p62
    %s65 = sadd.s32 %s64, 1
    %p68 = scmp.eq.s32.totalorder %s9, 2
    %p69 = scmp.ne.s32.totalorder %s64, %s66
    %p70 = scmp.eq.s32.totalorder %s9, 0
    %p71 = por %p69, %p70
    %p72 = scmp.ne.s32.totalorder %s64, %s66
    %p73 = scmp.eq.s32.totalorder %s14, 2
    %p74 = por %p72, %p73
    %p75 = scmp.ne.s32.totalorder %s66, %s67
    %p76 = scmp.eq.s32.totalorder %s14, 0
    %p77 = por %p75, %p76
    %p78 = scmp.ne.s32.totalorder %s66, %s67
    %p79 = scmp.eq.s32.totalorder %s15, 2
    %p80 = por %p78, %p79
    %p82 = scmp.ne.s32.totalorder %s67, %s81
    %p83 = scmp.eq.s32.totalorder %s15, 0
    %p84 = por %p82, %p83
    %s85 = ssub.s32 %s9, %s16
    %p86 = scmp.eq.s32.totalorder %s85, 0
    %s88 = sadd.s32 %s87, 1
    %s89 = scalar_select %p86, %s87, %s88
    %p92 = pneg %p86
    %p93 = scmp.eq.s32.totalorder %s9, 2
    %p94 = por %p92, %p93
    %p95 = scmp.ne.s32.totalorder %s87, %s90
    %p96 = scmp.eq.s32.totalorder %s9, 0
    %p97 = por %p95, %p96
    %p98 = scmp.ne.s32.totalorder %s87, %s90
    %p99 = scmp.eq.s32.totalorder %s14, 2
    %p100 = por %p98, %p99
    %p101 = scmp.ne.s32.totalorder %s90, %s91
    %p102 = scmp.eq.s32.totalorder %s14, 0
    %p103 = por %p101, %p102
    %p104 = scmp.ne.s32.totalorder %s90, %s91
    %p105 = scmp.eq.s32.totalorder %s15, 2
    %p106 = por %p104, %p105
    %p108 = scmp.ne.s32.totalorder %s91, %s107
    %p109 = scmp.eq.s32.totalorder %s15, 0
    %p110 = por %p108, %p109
    %p111 = scmp.le.s32.totalorder 1, %s9
    %p112 = scmp.lt.s32.totalorder %s9, 4
    %p113 = pnand %p111, %p112
    %p114 = pneg %p113
    // Predicated region
    $region9: #{tpu_custom_call.1} parent=5 // pred_check
      _
    $region10: #{tpu_custom_call.1} parent=5 // pred_check_branch
      %116 = sbr.rel (%p113) target = $region12
    $region11: #{tpu_custom_call.1} parent=5 // pred_region
      %s117 = ssub.s32 %s9, 1
      // Predicated region
      $region13: #{tpu_custom_call.1} parent=11 // pred_check
        %p118 = pneg %p56
      $region14: #{tpu_custom_call.1} parent=11 // pred_check_branch
        %120 = sbr.rel (%p118) target = $region16
      $region15: #{tpu_custom_call.1} parent=11 // pred_region
        _
      $region16: #{tpu_custom_call.1} parent=11 // pred_fallthru
        _
      // Predicated region
      $region17: #{tpu_custom_call.1} parent=11 // pred_check
        %p121 = pneg %p77
      $region18: #{tpu_custom_call.1} parent=11 // pred_check_branch
        %123 = sbr.rel (%p121) target = $region20
      $region19: #{tpu_custom_call.1} parent=11 // pred_region
        _
      $region20: #{tpu_custom_call.1} parent=11 // pred_fallthru
        _
    $region12: #{tpu_custom_call.1} parent=5 // pred_fallthru
      _
    %p124 = scmp.lt.s32.totalorder %s9, 3
    // Predicated region
    $region21: #{tpu_custom_call.1} parent=5 // pred_check
      %p125 = pneg %p124
    $region22: #{tpu_custom_call.1} parent=5 // pred_check_branch
      %127 = sbr.rel (%p125) target = $region24
    $region23: #{tpu_custom_call.1} parent=5 // pred_region
      // Predicated region
      $region25: #{tpu_custom_call.1} parent=23 // pred_check
        %p128 = pneg %p29
      $region26: #{tpu_custom_call.1} parent=23 // pred_check_branch
        %130 = sbr.rel (%p128) target = $region28
      $region27: #{tpu_custom_call.1} parent=23 // pred_region
        %s131 = smul.u32 64, %s9
        %p132 = scmp.lt.s32.totalorder %s131, 191
        %s133 = scalar_select %p132, %s131, 191
        %s134 = smul.addr %s133, 8
        %s135 = scalar_lea.vmem %s0, %s134
        %s136 = smul.u32 64, %s9
      $region28: #{tpu_custom_call.1} parent=23 // pred_fallthru
        _
    $region24: #{tpu_custom_call.1} parent=5 // pred_fallthru
      _
    %p137 = scmp.le.s32.totalorder 1, %s9
    %p138 = scmp.lt.s32.totalorder %s9, 4
    %p139 = pnand %p137, %p138
    %p140 = pneg %p139
    // Predicated region
    $region29: #{tpu_custom_call.1} parent=5 // pred_check
      _
    $region30: #{tpu_custom_call.1} parent=5 // pred_check_branch
      %142 = sbr.rel (%p139) target = $region32
    $region31: #{tpu_custom_call.1} parent=5 // pred_region
      %s143 = ssub.s32 %s9, 1
      %s144 = smul.u32 64, %s14
      %p145 = scmp.lt.s32.totalorder %s144, 191
      %s146 = scalar_select %p145, %s144, 191
      %s147 = smul.addr %s146, 8
      %s148 = scalar_lea.vmem %s0, %s147
      %p149 = pneg %p35
      %p150 = pneg %p32
      %p151 = pneg %p56
      %p152 = pneg %p53
      %p153 = pneg %p77
      %p154 = pneg %p74
      %p155 = pneg %p103
      %p156 = pneg %p100
      %s157 = smul.u32 64, %s14
      %p158 = scmp.lt.s32.totalorder %s157, 191
      %s159 = scalar_select %p158, %s157, 191
      %s160 = smul.addr %s159, 8
      %s161 = scalar_lea.vmem %s3, %s160
      %s162 = smul.u32 64, %s14
      %p163 = scmp.lt.s32.totalorder %s162, 191
      %s164 = scalar_select %p163, %s162, 191
      %s165 = smul.addr %s164, 8
      %s166 = scalar_lea.vmem %s0, %s165
      %s167 = smul.u32 64, %s14
      %s168 = smul.u32 64, %s14
      %p169 = scmp.lt.s32.totalorder %s168, 191
      %s170 = scalar_select %p169, %s168, 191
      %s171 = smul.addr %s170, 8
      %s172 = scalar_lea.vmem %s3, %s171
      %s173 = smul.u32 64, %s14
      %v174 = vld [vmem:[%s166] sm:$0xff]
      %v175 = vld [vmem:[%s166 + $0x8] sm:$0xff]
      %v176 = vld [vmem:[%s166 + $0x10] sm:$0xff]
      %v177 = vld [vmem:[%s166 + $0x18] sm:$0xff]
      %v178 = vld [vmem:[%s166 + $0x20] sm:$0xff]
      %v179 = vld [vmem:[%s166 + $0x28] sm:$0xff]
      %v180 = vld [vmem:[%s166 + $0x30] sm:$0xff]
      %v181 = vld [vmem:[%s166 + $0x38] sm:$0xff]
      %v182 = vld [vmem:[%s166 + $0x40] sm:$0xff]
      %v183 = vld [vmem:[%s166 + $0x48] sm:$0xff]
      %v184 = vld [vmem:[%s166 + $0x50] sm:$0xff]
      %v185 = vld [vmem:[%s166 + $0x58] sm:$0xff]
      %v186 = vld [vmem:[%s166 + $0x60] sm:$0xff]
      %v187 = vld [vmem:[%s166 + $0x68] sm:$0xff]
      %v188 = vld [vmem:[%s166 + $0x70] sm:$0xff]
      %v189 = vld [vmem:[%s166 + $0x78] sm:$0xff]
      %v190 = vld [vmem:[%s166 + $0x80] sm:$0xff]
      %v191 = vld [vmem:[%s166 + $0x88] sm:$0xff]
      %v192 = vld [vmem:[%s166 + $0x90] sm:$0xff]
      %v193 = vld [vmem:[%s166 + $0x98] sm:$0xff]
      %v194 = vld [vmem:[%s166 + $0xa0] sm:$0xff]
      %v195 = vld [vmem:[%s166 + $0xa8] sm:$0xff]
      %v196 = vld [vmem:[%s166 + $0xb0] sm:$0xff]
      %v197 = vld [vmem:[%s166 + $0xb8] sm:$0xff]
      %v198 = vld [vmem:[%s166 + $0xc0] sm:$0xff]
      %v199 = vld [vmem:[%s166 + $0xc8] sm:$0xff]
      %v200 = vld [vmem:[%s166 + $0xd0] sm:$0xff]
      %v201 = vld [vmem:[%s166 + $0xd8] sm:$0xff]
      %v202 = vld [vmem:[%s166 + $0xe0] sm:$0xff]
      %v203 = vld [vmem:[%s166 + $0xe8] sm:$0xff]
      %v204 = vld [vmem:[%s166 + $0xf0] sm:$0xff]
      %v205 = vld [vmem:[%s166 + $0xf8] sm:$0xff]
      %v206 = vld [vmem:[%s166 + $0x100] sm:$0xff]
      %v207 = vld [vmem:[%s166 + $0x108] sm:$0xff]
      %v208 = vld [vmem:[%s166 + $0x110] sm:$0xff]
      %v209 = vld [vmem:[%s166 + $0x118] sm:$0xff]
      %v210 = vld [vmem:[%s166 + $0x120] sm:$0xff]
      %v211 = vld [vmem:[%s166 + $0x128] sm:$0xff]
      %v212 = vld [vmem:[%s166 + $0x130] sm:$0xff]
      %v213 = vld [vmem:[%s166 + $0x138] sm:$0xff]
      %v214 = vld [vmem:[%s166 + $0x140] sm:$0xff]
      %v215 = vld [vmem:[%s166 + $0x148] sm:$0xff]
      %v216 = vld [vmem:[%s166 + $0x150] sm:$0xff]
      %v217 = vld [vmem:[%s166 + $0x158] sm:$0xff]
      %v218 = vld [vmem:[%s166 + $0x160] sm:$0xff]
      %v219 = vld [vmem:[%s166 + $0x168] sm:$0xff]
      %v220 = vld [vmem:[%s166 + $0x170] sm:$0xff]
      %v221 = vld [vmem:[%s166 + $0x178] sm:$0xff]
      %v222 = vld [vmem:[%s166 + $0x180] sm:$0xff]
      %v223 = vld [vmem:[%s166 + $0x188] sm:$0xff]
      %v224 = vld [vmem:[%s166 + $0x190] sm:$0xff]
      %v225 = vld [vmem:[%s166 + $0x198] sm:$0xff]
      %v226 = vld [vmem:[%s166 + $0x1a0] sm:$0xff]
      %v227 = vld [vmem:[%s166 + $0x1a8] sm:$0xff]
      %v228 = vld [vmem:[%s166 + $0x1b0] sm:$0xff]
      %v229 = vld [vmem:[%s166 + $0x1b8] sm:$0xff]
      %v230 = vld [vmem:[%s166 + $0x1c0] sm:$0xff]
      %v231 = vld [vmem:[%s166 + $0x1c8] sm:$0xff]
      %v232 = vld [vmem:[%s166 + $0x1d0] sm:$0xff]
      %v233 = vld [vmem:[%s166 + $0x1d8] sm:$0xff]
      %v234 = vld [vmem:[%s166 + $0x1e0] sm:$0xff]
      %v235 = vld [vmem:[%s166 + $0x1e8] sm:$0xff]
      %v236 = vld [vmem:[%s166 + $0x1f0] sm:$0xff]
      %v237 = vld [vmem:[%s166 + $0x1f8] sm:$0xff]
      %v238 = vld [vmem:[%s1] sm:$0x3f]
      %v239 = vld [vmem:[%s2] sm:$0x1]
      %v241 = vlaneseq
      %v242 = vshrl.u32 %v241, 7
      %v243 = vsub.s32 0, %v242
      %v244 = vrot.slane %v239, %v243
      %vm246 = vcmask 48128
      %v248 = vsel %vm246, %v174, 0
      %v251 = vsel %vm246, %v175, 0
      %v254 = vsel %vm246, %v176, 0
      %v257 = vsel %vm246, %v177, 0
      %v260 = vsel %vm246, %v178, 0
      %v263 = vsel %vm246, %v179, 0
      %v266 = vsel %vm246, %v180, 0
      %v269 = vsel %vm246, %v181, 0
      %v272 = vsel %vm246, %v182, 0
      %v275 = vsel %vm246, %v183, 0
      %v278 = vsel %vm246, %v184, 0
      %v281 = vsel %vm246, %v185, 0
      %v284 = vsel %vm246, %v186, 0
      %v287 = vsel %vm246, %v187, 0
      %v290 = vsel %vm246, %v188, 0
      %v293 = vsel %vm246, %v189, 0
      %v296 = vsel %vm246, %v190, 0
      %v299 = vsel %vm246, %v191, 0
      %v302 = vsel %vm246, %v192, 0
      %v305 = vsel %vm246, %v193, 0
      %v308 = vsel %vm246, %v194, 0
      %v311 = vsel %vm246, %v195, 0
      %v314 = vsel %vm246, %v196, 0
      %v317 = vsel %vm246, %v197, 0
      %v320 = vsel %vm246, %v198, 0
      %v323 = vsel %vm246, %v199, 0
      %v326 = vsel %vm246, %v200, 0
      %v329 = vsel %vm246, %v201, 0
      %v332 = vsel %vm246, %v202, 0
      %v335 = vsel %vm246, %v203, 0
      %v338 = vsel %vm246, %v204, 0
      %v341 = vsel %vm246, %v205, 0
      %v344 = vsel %vm246, %v206, 0
      %v347 = vsel %vm246, %v207, 0
      %v350 = vsel %vm246, %v208, 0
      %v353 = vsel %vm246, %v209, 0
      %v356 = vsel %vm246, %v210, 0
      %v359 = vsel %vm246, %v211, 0
      %v362 = vsel %vm246, %v212, 0
      %v365 = vsel %vm246, %v213, 0
      %v368 = vsel %vm246, %v214, 0
      %v371 = vsel %vm246, %v215, 0
      %v374 = vsel %vm246, %v216, 0
      %v377 = vsel %vm246, %v217, 0
      %v380 = vsel %vm246, %v218, 0
      %v383 = vsel %vm246, %v219, 0
      %v386 = vsel %vm246, %v220, 0
      %v389 = vsel %vm246, %v221, 0
      %v392 = vsel %vm246, %v222, 0
      %v395 = vsel %vm246, %v223, 0
      %v398 = vsel %vm246, %v224, 0
      %v401 = vsel %vm246, %v225, 0
      %v404 = vsel %vm246, %v226, 0
      %v407 = vsel %vm246, %v227, 0
      %v410 = vsel %vm246, %v228, 0
      %v413 = vsel %vm246, %v229, 0
      %v416 = vsel %vm246, %v230, 0
      %v419 = vsel %vm246, %v231, 0
      %v422 = vsel %vm246, %v232, 0
      %v425 = vsel %vm246, %v233, 0
      %v428 = vsel %vm246, %v234, 0
      %v431 = vsel %vm246, %v235, 0
      %v434 = vsel %vm246, %v236, 0
      %v437 = vsel %vm246, %v237, 0
      %vm439 = vcmask 1045504
      %v441 = vsel %vm439, %v238, 0
      %443 = vmatprep.subr.mxu0 0.0
      %444 = vmatpush1.msra.mxu0 %v441
      %445 = vmatprep.subr.mxu0 0.0
      %446 = vmatpush1.msra.mxu0 0.0
      %447 = vmatprep.subr.mxu0 0.0
      %448 = vmatpush1.msra.mxu0 0.0
      %449 = vmatprep.subr.mxu0 0.0
      %450 = vmatpush1.msra.mxu0 0.0
      %451 = vmatprep.subr.mxu0 0.0
      %452 = vmatpush1.msra.mxu0 0.0
      %453 = vmatprep.subr.mxu0 0.0
      %454 = vmatpush1.msra.mxu0 0.0
      %455 = vmatprep.subr.mxu0 0.0
      %456 = vmatpush1.msra.mxu0 0.0
      %457 = vmatprep.subr.mxu0 0.0
      %458 = vmatpush1.msra.mxu0 0.0
      %459 = vmatprep.subr.mxu0 0.0
      %460 = vmatpush1.msra.mxu0 0.0
      %461 = vmatprep.subr.mxu0 0.0
      %462 = vmatpush1.msra.mxu0 0.0
      %463 = vmatprep.subr.mxu0 0.0
      %464 = vmatpush1.msra.mxu0 0.0
      %465 = vmatprep.subr.mxu0 0.0
      %466 = vmatpush1.msra.mxu0 0.0
      %467 = vmatprep.subr.mxu0 0.0
      %468 = vmatpush1.msra.mxu0 0.0
      %469 = vmatprep.subr.mxu0 0.0
      %470 = vmatpush1.msra.mxu0 0.0
      %471 = vmatprep.subr.mxu0 0.0
      %472 = vmatpush1.msra.mxu0 0.0
      %473 = vmatprep.subr.mxu0 0.0
      %474 = vmatpush1.msra.mxu0 0.0
      %475 = vmatprep.subr.mxu0 0.0
      %476 = vmatpush1.msra.mxu0 0.0
      %477 = vmatprep.subr.mxu0 0.0
      %478 = vmatpush1.msra.mxu0 0.0
      %479 = vmatprep.subr.mxu0 0.0
      %480 = vmatpush1.msra.mxu0 0.0
      %481 = vmatprep.subr.mxu0 0.0
      %482 = vmatpush1.msra.mxu0 0.0
      %483 = vmatprep.subr.mxu0 0.0
      %484 = vmatpush1.msra.mxu0 0.0
      %485 = vmatprep.subr.mxu0 0.0
      %486 = vmatpush1.msra.mxu0 0.0
      %487 = vmatprep.subr.mxu0 0.0
      %488 = vmatpush1.msra.mxu0 0.0
      %489 = vmatprep.subr.mxu0 0.0
      %490 = vmatpush1.msra.mxu0 0.0
      %491 = vmatprep.subr.mxu0 0.0
      %492 = vmatpush1.msra.mxu0 0.0
      %493 = vmatprep.subr.mxu0 0.0
      %494 = vmatpush1.msra.mxu0 0.0
      %495 = vmatprep.subr.mxu0 0.0
      %496 = vmatpush1.msra.mxu0 0.0
      %497 = vmatprep.subr.mxu0 0.0
      %498 = vmatpush1.msra.mxu0 0.0
      %499 = vmatprep.subr.mxu0 0.0
      %500 = vmatpush1.msra.mxu0 0.0
      %501 = vmatprep.subr.mxu0 0.0
      %502 = vmatpush1.msra.mxu0 0.0
      %503 = vmatprep.subr.mxu0 0.0
      %504 = vmatpush1.msra.mxu0 0.0
      %505 = vmatprep.subr.mxu0 0.0
      %506 = vmatpush1.msra.mxu0 0.0
      %507 = vmatprep.mubr.f32.mxu0 0.0
      %508 = vmatmul.mubr.f32.gmra.mrb[0].mxu0 %v248
      %v509 = vpop.f32.mrb[0].mxu0
      %v510 = vadd.f32 %v244, %v509
      %v511 = vpop.f32.mrb[0].mxu0
      %512 = vmatprep.mubr.f32.mxu0 0.0
      %513 = vmatmul.mubr.f32.gmra.mrb[0].mxu0 %v251
      %v514 = vpop.f32.mrb[0].mxu0
      %v515 = vadd.f32 %v244, %v514
      %v516 = vpop.f32.mrb[0].mxu0
      %517 = vmatprep.mubr.f32.mxu0 0.0
      %518 = vmatmul.mubr.f32.gmra.mrb[0].mxu0 %v254
      %v519 = vpop.f32.mrb[0].mxu0
      %v520 = vadd.f32 %v244, %v519
      %v521 = vpop.f32.mrb[0].mxu0
      %522 = vmatprep.mubr.f32.mxu0 0.0
      %523 = vmatmul.mubr.f32.gmra.mrb[0].mxu0 %v257
      %v524 = vpop.f32.mrb[0].mxu0
      %v525 = vadd.f32 %v244, %v524
      %v526 = vpop.f32.mrb[0].mxu0
      %527 = vmatprep.mubr.f32.mxu0 0.0
      %528 = vmatmul.mubr.f32.gmra.mrb[0].mxu0 %v260
      %v529 = vpop.f32.mrb[0].mxu0
      %v530 = vadd.f32 %v244, %v529
      %v531 = vpop.f32.mrb[0].mxu0
      %532 = vmatprep.mubr.f32.mxu0 0.0
      %533 = vmatmul.mubr.f32.gmra.mrb[0].mxu0 %v263
      %v534 = vpop.f32.mrb[0].mxu0
      %v535 = vadd.f32 %v244, %v534
      %v536 = vpop.f32.mrb[0].mxu0
      %537 = vmatprep.mubr.f32.mxu0 0.0
      %538 = vmatmul.mubr.f32.gmra.mrb[0].mxu0 %v266
      %v539 = vpop.f32.mrb[0].mxu0
      %v540 = vadd.f32 %v244, %v539
      %v541 = vpop.f32.mrb[0].mxu0
      %542 = vmatprep.mubr.f32.mxu0 0.0
      %543 = vmatmul.mubr.f32.gmra.mrb[0].mxu0 %v269
      %v544 = vpop.f32.mrb[0].mxu0
      %v545 = vadd.f32 %v244, %v544
      %v546 = vpop.f32.mrb[0].mxu0
      %547 = vmatprep.mubr.f32.mxu0 0.0
      %548 = vmatmul.mubr.f32.gmra.mrb[0].mxu0 %v272
      %v549 = vpop.f32.mrb[0].mxu0
      %v550 = vadd.f32 %v244, %v549
      %v551 = vpop.f32.mrb[0].mxu0
      %552 = vmatprep.mubr.f32.mxu0 0.0
      %553 = vmatmul.mubr.f32.gmra.mrb[0].mxu0 %v275
      %v554 = vpop.f32.mrb[0].mxu0
      %v555 = vadd.f32 %v244, %v554
      %v556 = vpop.f32.mrb[0].mxu0
      %557 = vmatprep.mubr.f32.mxu0 0.0
      %558 = vmatmul.mubr.f32.gmra.mrb[0].mxu0 %v278
      %v559 = vpop.f32.mrb[0].mxu0
      %v560 = vadd.f32 %v244, %v559
      %v561 = vpop.f32.mrb[0].mxu0
      %562 = vmatprep.mubr.f32.mxu0 0.0
      %563 = vmatmul.mubr.f32.gmra.mrb[0].mxu0 %v281
      %v564 = vpop.f32.mrb[0].mxu0
      %v565 = vadd.f32 %v244, %v564
      %v566 = vpop.f32.mrb[0].mxu0
      %567 = vmatprep.mubr.f32.mxu0 0.0
      %568 = vmatmul.mubr.f32.gmra.mrb[0].mxu0 %v284
      %v569 = vpop.f32.mrb[0].mxu0
      %v570 = vadd.f32 %v244, %v569
      %v571 = vpop.f32.mrb[0].mxu0
      %572 = vmatprep.mubr.f32.mxu0 0.0
      %573 = vmatmul.mubr.f32.gmra.mrb[0].mxu0 %v287
      %v574 = vpop.f32.mrb[0].mxu0
      %v575 = vadd.f32 %v244, %v574
      %v576 = vpop.f32.mrb[0].mxu0
      %577 = vmatprep.mubr.f32.mxu0 0.0
      %578 = vmatmul.mubr.f32.gmra.mrb[0].mxu0 %v290
      %v579 = vpop.f32.mrb[0].mxu0
      %v580 = vadd.f32 %v244, %v579
      %v581 = vpop.f32.mrb[0].mxu0
      %582 = vmatprep.mubr.f32.mxu0 0.0
      %583 = vmatmul.mubr.f32.gmra.mrb[0].mxu0 %v293
      %v584 = vpop.f32.mrb[0].mxu0
      %v585 = vadd.f32 %v244, %v584
      %v586 = vpop.f32.mrb[0].mxu0
      %587 = vmatprep.mubr.f32.mxu0 0.0
      %588 = vmatmul.mubr.f32.gmra.mrb[0].mxu0 %v296
      %v589 = vpop.f32.mrb[0].mxu0
      %v590 = vadd.f32 %v244, %v589
      %v591 = vpop.f32.mrb[0].mxu0
      %592 = vmatprep.mubr.f32.mxu0 0.0
      %593 = vmatmul.mubr.f32.gmra.mrb[0].mxu0 %v299
      %v594 = vpop.f32.mrb[0].mxu0
      %v595 = vadd.f32 %v244, %v594
      %v596 = vpop.f32.mrb[0].mxu0
      %597 = vmatprep.mubr.f32.mxu0 0.0
      %598 = vmatmul.mubr.f32.gmra.mrb[0].mxu0 %v302
      %v599 = vpop.f32.mrb[0].mxu0
      %v600 = vadd.f32 %v244, %v599
      %v601 = vpop.f32.mrb[0].mxu0
      %602 = vmatprep.mubr.f32.mxu0 0.0
      %603 = vmatmul.mubr.f32.gmra.mrb[0].mxu0 %v305
      %v604 = vpop.f32.mrb[0].mxu0
      %v605 = vadd.f32 %v244, %v604
      %v606 = vpop.f32.mrb[0].mxu0
      %607 = vmatprep.mubr.f32.mxu0 0.0
      %608 = vmatmul.mubr.f32.gmra.mrb[0].mxu0 %v308
      %v609 = vpop.f32.mrb[0].mxu0
      %v610 = vadd.f32 %v244, %v609
      %v611 = vpop.f32.mrb[0].mxu0
      %612 = vmatprep.mubr.f32.mxu0 0.0
      %613 = vmatmul.mubr.f32.gmra.mrb[0].mxu0 %v311
      %v614 = vpop.f32.mrb[0].mxu0
      %v615 = vadd.f32 %v244, %v614
      %v616 = vpop.f32.mrb[0].mxu0
      %617 = vmatprep.mubr.f32.mxu0 0.0
      %618 = vmatmul.mubr.f32.gmra.mrb[0].mxu0 %v314
      %v619 = vpop.f32.mrb[0].mxu0
      %v620 = vadd.f32 %v244, %v619
      %v621 = vpop.f32.mrb[0].mxu0
      %622 = vmatprep.mubr.f32.mxu0 0.0
      %623 = vmatmul.mubr.f32.gmra.mrb[0].mxu0 %v317
      %v624 = vpop.f32.mrb[0].mxu0
      %v625 = vadd.f32 %v244, %v624
      %v626 = vpop.f32.mrb[0].mxu0
      %627 = vmatprep.mubr.f32.mxu0 0.0
      %628 = vmatmul.mubr.f32.gmra.mrb[0].mxu0 %v320
      %v629 = vpop.f32.mrb[0].mxu0
      %v630 = vadd.f32 %v244, %v629
      %v631 = vpop.f32.mrb[0].mxu0
      %632 = vmatprep.mubr.f32.mxu0 0.0
      %633 = vmatmul.mubr.f32.gmra.mrb[0].mxu0 %v323
      %v634 = vpop.f32.mrb[0].mxu0
      %v635 = vadd.f32 %v244, %v634
      %v636 = vpop.f32.mrb[0].mxu0
      %637 = vmatprep.mubr.f32.mxu0 0.0
      %638 = vmatmul.mubr.f32.gmra.mrb[0].mxu0 %v326
      %v639 = vpop.f32.mrb[0].mxu0
      %v640 = vadd.f32 %v244, %v639
      %v641 = vpop.f32.mrb[0].mxu0
      %642 = vmatprep.mubr.f32.mxu0 0.0
      %643 = vmatmul.mubr.f32.gmra.mrb[0].mxu0 %v329
      %v644 = vpop.f32.mrb[0].mxu0
      %v645 = vadd.f32 %v244, %v644
      %v646 = vpop.f32.mrb[0].mxu0
      %647 = vmatprep.mubr.f32.mxu0 0.0
      %648 = vmatmul.mubr.f32.gmra.mrb[0].mxu0 %v332
      %v649 = vpop.f32.mrb[0].mxu0
      %v650 = vadd.f32 %v244, %v649
      %v651 = vpop.f32.mrb[0].mxu0
      %652 = vmatprep.mubr.f32.mxu0 0.0
      %653 = vmatmul.mubr.f32.gmra.mrb[0].mxu0 %v335
      %v654 = vpop.f32.mrb[0].mxu0
      %v655 = vadd.f32 %v244, %v654
      %v656 = vpop.f32.mrb[0].mxu0
      %657 = vmatprep.mubr.f32.mxu0 0.0
      %658 = vmatmul.mubr.f32.gmra.mrb[0].mxu0 %v338
      %v659 = vpop.f32.mrb[0].mxu0
      %v660 = vadd.f32 %v244, %v659
      %v661 = vpop.f32.mrb[0].mxu0
      %662 = vmatprep.mubr.f32.mxu0 0.0
      %663 = vmatmul.mubr.f32.gmra.mrb[0].mxu0 %v341
      %v664 = vpop.f32.mrb[0].mxu0
      %v665 = vadd.f32 %v244, %v664
      %v666 = vpop.f32.mrb[0].mxu0
      %667 = vmatprep.mubr.f32.mxu0 0.0
      %668 = vmatmul.mubr.f32.gmra.mrb[0].mxu0 %v344
      %v669 = vpop.f32.mrb[0].mxu0
      %v670 = vadd.f32 %v244, %v669
      %v671 = vpop.f32.mrb[0].mxu0
      %672 = vmatprep.mubr.f32.mxu0 0.0
      %673 = vmatmul.mubr.f32.gmra.mrb[0].mxu0 %v347
      %v674 = vpop.f32.mrb[0].mxu0
      %v675 = vadd.f32 %v244, %v674
      %v676 = vpop.f32.mrb[0].mxu0
      %677 = vmatprep.mubr.f32.mxu0 0.0
      %678 = vmatmul.mubr.f32.gmra.mrb[0].mxu0 %v350
      %v679 = vpop.f32.mrb[0].mxu0
      %v680 = vadd.f32 %v244, %v679
      %v681 = vpop.f32.mrb[0].mxu0
      %682 = vmatprep.mubr.f32.mxu0 0.0
      %683 = vmatmul.mubr.f32.gmra.mrb[0].mxu0 %v353
      %v684 = vpop.f32.mrb[0].mxu0
      %v685 = vadd.f32 %v244, %v684
      %v686 = vpop.f32.mrb[0].mxu0
      %687 = vmatprep.mubr.f32.mxu0 0.0
      %688 = vmatmul.mubr.f32.gmra.mrb[0].mxu0 %v356
      %v689 = vpop.f32.mrb[0].mxu0
      %v690 = vadd.f32 %v244, %v689
      %v691 = vpop.f32.mrb[0].mxu0
      %692 = vmatprep.mubr.f32.mxu0 0.0
      %693 = vmatmul.mubr.f32.gmra.mrb[0].mxu0 %v359
      %v694 = vpop.f32.mrb[0].mxu0
      %v695 = vadd.f32 %v244, %v694
      %v696 = vpop.f32.mrb[0].mxu0
      %697 = vmatprep.mubr.f32.mxu0 0.0
      %698 = vmatmul.mubr.f32.gmra.mrb[0].mxu0 %v362
      %v699 = vpop.f32.mrb[0].mxu0
      %v700 = vadd.f32 %v244, %v699
      %v701 = vpop.f32.mrb[0].mxu0
      %702 = vmatprep.mubr.f32.mxu0 0.0
      %703 = vmatmul.mubr.f32.gmra.mrb[0].mxu0 %v365
      %v704 = vpop.f32.mrb[0].mxu0
      %v705 = vadd.f32 %v244, %v704
      %v706 = vpop.f32.mrb[0].mxu0
      %707 = vmatprep.mubr.f32.mxu0 0.0
      %708 = vmatmul.mubr.f32.gmra.mrb[0].mxu0 %v368
      %v709 = vpop.f32.mrb[0].mxu0
      %v710 = vadd.f32 %v244, %v709
      %v711 = vpop.f32.mrb[0].mxu0
      %712 = vmatprep.mubr.f32.mxu0 0.0
      %713 = vmatmul.mubr.f32.gmra.mrb[0].mxu0 %v371
      %v714 = vpop.f32.mrb[0].mxu0
      %v715 = vadd.f32 %v244, %v714
      %v716 = vpop.f32.mrb[0].mxu0
      %717 = vmatprep.mubr.f32.mxu0 0.0
      %718 = vmatmul.mubr.f32.gmra.mrb[0].mxu0 %v374
      %v719 = vpop.f32.mrb[0].mxu0
      %v720 = vadd.f32 %v244, %v719
      %v721 = vpop.f32.mrb[0].mxu0
      %722 = vmatprep.mubr.f32.mxu0 0.0
      %723 = vmatmul.mubr.f32.gmra.mrb[0].mxu0 %v377
      %v724 = vpop.f32.mrb[0].mxu0
      %v725 = vadd.f32 %v244, %v724
      %v726 = vpop.f32.mrb[0].mxu0
      %727 = vmatprep.mubr.f32.mxu0 0.0
      %728 = vmatmul.mubr.f32.gmra.mrb[0].mxu0 %v380
      %v729 = vpop.f32.mrb[0].mxu0
      %v730 = vadd.f32 %v244, %v729
      %v731 = vpop.f32.mrb[0].mxu0
      %732 = vmatprep.mubr.f32.mxu0 0.0
      %733 = vmatmul.mubr.f32.gmra.mrb[0].mxu0 %v383
      %v734 = vpop.f32.mrb[0].mxu0
      %v735 = vadd.f32 %v244, %v734
      %v736 = vpop.f32.mrb[0].mxu0
      %737 = vmatprep.mubr.f32.mxu0 0.0
      %738 = vmatmul.mubr.f32.gmra.mrb[0].mxu0 %v386
      %v739 = vpop.f32.mrb[0].mxu0
      %v740 = vadd.f32 %v244, %v739
      %v741 = vpop.f32.mrb[0].mxu0
      %742 = vmatprep.mubr.f32.mxu0 0.0
      %743 = vmatmul.mubr.f32.gmra.mrb[0].mxu0 %v389
      %v744 = vpop.f32.mrb[0].mxu0
      %v745 = vadd.f32 %v244, %v744
      %v746 = vpop.f32.mrb[0].mxu0
      %747 = vmatprep.mubr.f32.mxu0 0.0
      %748 = vmatmul.mubr.f32.gmra.mrb[0].mxu0 %v392
      %v749 = vpop.f32.mrb[0].mxu0
      %v750 = vadd.f32 %v244, %v749
      %v751 = vpop.f32.mrb[0].mxu0
      %752 = vmatprep.mubr.f32.mxu0 0.0
      %753 = vmatmul.mubr.f32.gmra.mrb[0].mxu0 %v395
      %v754 = vpop.f32.mrb[0].mxu0
      %v755 = vadd.f32 %v244, %v754
      %v756 = vpop.f32.mrb[0].mxu0
      %757 = vmatprep.mubr.f32.mxu0 0.0
      %758 = vmatmul.mubr.f32.gmra.mrb[0].mxu0 %v398
      %v759 = vpop.f32.mrb[0].mxu0
      %v760 = vadd.f32 %v244, %v759
      %v761 = vpop.f32.mrb[0].mxu0
      %762 = vmatprep.mubr.f32.mxu0 0.0
      %763 = vmatmul.mubr.f32.gmra.mrb[0].mxu0 %v401
      %v764 = vpop.f32.mrb[0].mxu0
      %v765 = vadd.f32 %v244, %v764
      %v766 = vpop.f32.mrb[0].mxu0
      %767 = vmatprep.mubr.f32.mxu0 0.0
      %768 = vmatmul.mubr.f32.gmra.mrb[0].mxu0 %v404
      %v769 = vpop.f32.mrb[0].mxu0
      %v770 = vadd.f32 %v244, %v769
      %v771 = vpop.f32.mrb[0].mxu0
      %772 = vmatprep.mubr.f32.mxu0 0.0
      %773 = vmatmul.mubr.f32.gmra.mrb[0].mxu0 %v407
      %v774 = vpop.f32.mrb[0].mxu0
      %v775 = vadd.f32 %v244, %v774
      %v776 = vpop.f32.mrb[0].mxu0
      %777 = vmatprep.mubr.f32.mxu0 0.0
      %778 = vmatmul.mubr.f32.gmra.mrb[0].mxu0 %v410
      %v779 = vpop.f32.mrb[0].mxu0
      %v780 = vadd.f32 %v244, %v779
      %v781 = vpop.f32.mrb[0].mxu0
      %782 = vmatprep.mubr.f32.mxu0 0.0
      %783 = vmatmul.mubr.f32.gmra.mrb[0].mxu0 %v413
      %v784 = vpop.f32.mrb[0].mxu0
      %v785 = vadd.f32 %v244, %v784
      %v786 = vpop.f32.mrb[0].mxu0
      %787 = vmatprep.mubr.f32.mxu0 0.0
      %788 = vmatmul.mubr.f32.gmra.mrb[0].mxu0 %v416
      %v789 = vpop.f32.mrb[0].mxu0
      %v790 = vadd.f32 %v244, %v789
      %v791 = vpop.f32.mrb[0].mxu0
      %792 = vmatprep.mubr.f32.mxu0 0.0
      %793 = vmatmul.mubr.f32.gmra.mrb[0].mxu0 %v419
      %v794 = vpop.f32.mrb[0].mxu0
      %v795 = vadd.f32 %v244, %v794
      %v796 = vpop.f32.mrb[0].mxu0
      %797 = vmatprep.mubr.f32.mxu0 0.0
      %798 = vmatmul.mubr.f32.gmra.mrb[0].mxu0 %v422
      %v799 = vpop.f32.mrb[0].mxu0
      %v800 = vadd.f32 %v244, %v799
      %v801 = vpop.f32.mrb[0].mxu0
      %802 = vmatprep.mubr.f32.mxu0 0.0
      %803 = vmatmul.mubr.f32.gmra.mrb[0].mxu0 %v425
      %v804 = vpop.f32.mrb[0].mxu0
      %v805 = vadd.f32 %v244, %v804
      %v806 = vpop.f32.mrb[0].mxu0
      %807 = vmatprep.mubr.f32.mxu0 0.0
      %808 = vmatmul.mubr.f32.gmra.mrb[0].mxu0 %v428
      %v809 = vpop.f32.mrb[0].mxu0
      %v810 = vadd.f32 %v244, %v809
      %v811 = vpop.f32.mrb[0].mxu0
      %812 = vmatprep.mubr.f32.mxu0 0.0
      %813 = vmatmul.mubr.f32.gmra.mrb[0].mxu0 %v431
      %v814 = vpop.f32.mrb[0].mxu0
      %v815 = vadd.f32 %v244, %v814
      %v816 = vpop.f32.mrb[0].mxu0
      %817 = vmatprep.mubr.f32.mxu0 0.0
      %818 = vmatmul.mubr.f32.gmra.mrb[0].mxu0 %v434
      %v819 = vpop.f32.mrb[0].mxu0
      %v820 = vadd.f32 %v244, %v819
      %v821 = vpop.f32.mrb[0].mxu0
      %822 = vmatprep.mubr.f32.mxu0 0.0
      %823 = vmatmul.mubr.f32.gmra.mrb[0].mxu0 %v437
      %v824 = vpop.f32.mrb[0].mxu0
      %v825 = vadd.f32 %v244, %v824
      %v826 = vpop.f32.mrb[0].mxu0
      %827 = vdwg.mxu0
      %v828 = vmax.f32 %v510, 0.0
      %v829 = vmax.f32 %v515, 0.0
      %v830 = vmax.f32 %v520, 0.0
      %v831 = vmax.f32 %v525, 0.0
      %v832 = vmax.f32 %v530, 0.0
      %v833 = vmax.f32 %v535, 0.0
      %v834 = vmax.f32 %v540, 0.0
      %v835 = vmax.f32 %v545, 0.0
      %v836 = vmax.f32 %v550, 0.0
      %v837 = vmax.f32 %v555, 0.0
      %v838 = vmax.f32 %v560, 0.0
      %v839 = vmax.f32 %v565, 0.0
      %v840 = vmax.f32 %v570, 0.0
      %v841 = vmax.f32 %v575, 0.0
      %v842 = vmax.f32 %v580, 0.0
      %v843 = vmax.f32 %v585, 0.0
      %v844 = vmax.f32 %v590, 0.0
      %v845 = vmax.f32 %v595, 0.0
      %v846 = vmax.f32 %v600, 0.0
      %v847 = vmax.f32 %v605, 0.0
      %v848 = vmax.f32 %v610, 0.0
      %v849 = vmax.f32 %v615, 0.0
      %v850 = vmax.f32 %v620, 0.0
      %v851 = vmax.f32 %v625, 0.0
      %v852 = vmax.f32 %v630, 0.0
      %v853 = vmax.f32 %v635, 0.0
      %v854 = vmax.f32 %v640, 0.0
      %v855 = vmax.f32 %v645, 0.0
      %v856 = vmax.f32 %v650, 0.0
      %v857 = vmax.f32 %v655, 0.0
      %v858 = vmax.f32 %v660, 0.0
      %v859 = vmax.f32 %v665, 0.0
      %v860 = vmax.f32 %v670, 0.0
      %v861 = vmax.f32 %v675, 0.0
      %v862 = vmax.f32 %v680, 0.0
      %v863 = vmax.f32 %v685, 0.0
      %v864 = vmax.f32 %v690, 0.0
      %v865 = vmax.f32 %v695, 0.0
      %v866 = vmax.f32 %v700, 0.0
      %v867 = vmax.f32 %v705, 0.0
      %v868 = vmax.f32 %v710, 0.0
      %v869 = vmax.f32 %v715, 0.0
      %v870 = vmax.f32 %v720, 0.0
      %v871 = vmax.f32 %v725, 0.0
      %v872 = vmax.f32 %v730, 0.0
      %v873 = vmax.f32 %v735, 0.0
      %v874 = vmax.f32 %v740, 0.0
      %v875 = vmax.f32 %v745, 0.0
      %v876 = vmax.f32 %v750, 0.0
      %v877 = vmax.f32 %v755, 0.0
      %v878 = vmax.f32 %v760, 0.0
      %v879 = vmax.f32 %v765, 0.0
      %v880 = vmax.f32 %v770, 0.0
      %v881 = vmax.f32 %v775, 0.0
      %v882 = vmax.f32 %v780, 0.0
      %v883 = vmax.f32 %v785, 0.0
      %v884 = vmax.f32 %v790, 0.0
      %v885 = vmax.f32 %v795, 0.0
      %v886 = vmax.f32 %v800, 0.0
      %v887 = vmax.f32 %v805, 0.0
      %v888 = vmax.f32 %v810, 0.0
      %v889 = vmax.f32 %v815, 0.0
      %v890 = vmax.f32 %v820, 0.0
      %v891 = vmax.f32 %v825, 0.0
      %vm892 = vcmask 31744
      %893 = vst.msk [vmem:[%s172] sm:$0xff] %vm892, %v828
      %894 = vst.msk [vmem:[%s172 + $0x8] sm:$0xff] %vm892, %v829
      %895 = vst.msk [vmem:[%s172 + $0x10] sm:$0xff] %vm892, %v830
      %896 = vst.msk [vmem:[%s172 + $0x18] sm:$0xff] %vm892, %v831
      %897 = vst.msk [vmem:[%s172 + $0x20] sm:$0xff] %vm892, %v832
      %898 = vst.msk [vmem:[%s172 + $0x28] sm:$0xff] %vm892, %v833
      %899 = vst.msk [vmem:[%s172 + $0x30] sm:$0xff] %vm892, %v834
      %900 = vst.msk [vmem:[%s172 + $0x38] sm:$0xff] %vm892, %v835
      %901 = vst.msk [vmem:[%s172 + $0x40] sm:$0xff] %vm892, %v836
      %902 = vst.msk [vmem:[%s172 + $0x48] sm:$0xff] %vm892, %v837
      %903 = vst.msk [vmem:[%s172 + $0x50] sm:$0xff] %vm892, %v838
      %904 = vst.msk [vmem:[%s172 + $0x58] sm:$0xff] %vm892, %v839
      %905 = vst.msk [vmem:[%s172 + $0x60] sm:$0xff] %vm892, %v840
      %906 = vst.msk [vmem:[%s172 + $0x68] sm:$0xff] %vm892, %v841
      %907 = vst.msk [vmem:[%s172 + $0x70] sm:$0xff] %vm892, %v842
      %908 = vst.msk [vmem:[%s172 + $0x78] sm:$0xff] %vm892, %v843
      %909 = vst.msk [vmem:[%s172 + $0x80] sm:$0xff] %vm892, %v844
      %910 = vst.msk [vmem:[%s172 + $0x88] sm:$0xff] %vm892, %v845
      %911 = vst.msk [vmem:[%s172 + $0x90] sm:$0xff] %vm892, %v846
      %912 = vst.msk [vmem:[%s172 + $0x98] sm:$0xff] %vm892, %v847
      %913 = vst.msk [vmem:[%s172 + $0xa0] sm:$0xff] %vm892, %v848
      %914 = vst.msk [vmem:[%s172 + $0xa8] sm:$0xff] %vm892, %v849
      %915 = vst.msk [vmem:[%s172 + $0xb0] sm:$0xff] %vm892, %v850
      %916 = vst.msk [vmem:[%s172 + $0xb8] sm:$0xff] %vm892, %v851
      %917 = vst.msk [vmem:[%s172 + $0xc0] sm:$0xff] %vm892, %v852
      %918 = vst.msk [vmem:[%s172 + $0xc8] sm:$0xff] %vm892, %v853
      %919 = vst.msk [vmem:[%s172 + $0xd0] sm:$0xff] %vm892, %v854
      %920 = vst.msk [vmem:[%s172 + $0xd8] sm:$0xff] %vm892, %v855
      %921 = vst.msk [vmem:[%s172 + $0xe0] sm:$0xff] %vm892, %v856
      %922 = vst.msk [vmem:[%s172 + $0xe8] sm:$0xff] %vm892, %v857
      %923 = vst.msk [vmem:[%s172 + $0xf0] sm:$0xff] %vm892, %v858
      %924 = vst.msk [vmem:[%s172 + $0xf8] sm:$0xff] %vm892, %v859
      %925 = vst.msk [vmem:[%s172 + $0x100] sm:$0xff] %vm892, %v860
      %926 = vst.msk [vmem:[%s172 + $0x108] sm:$0xff] %vm892, %v861
      %927 = vst.msk [vmem:[%s172 + $0x110] sm:$0xff] %vm892, %v862
      %928 = vst.msk [vmem:[%s172 + $0x118] sm:$0xff] %vm892, %v863
      %929 = vst.msk [vmem:[%s172 + $0x120] sm:$0xff] %vm892, %v864
      %930 = vst.msk [vmem:[%s172 + $0x128] sm:$0xff] %vm892, %v865
      %931 = vst.msk [vmem:[%s172 + $0x130] sm:$0xff] %vm892, %v866
      %932 = vst.msk [vmem:[%s172 + $0x138] sm:$0xff] %vm892, %v867
      %933 = vst.msk [vmem:[%s172 + $0x140] sm:$0xff] %vm892, %v868
      %934 = vst.msk [vmem:[%s172 + $0x148] sm:$0xff] %vm892, %v869
      %935 = vst.msk [vmem:[%s172 + $0x150] sm:$0xff] %vm892, %v870
      %936 = vst.msk [vmem:[%s172 + $0x158] sm:$0xff] %vm892, %v871
      %937 = vst.msk [vmem:[%s172 + $0x160] sm:$0xff] %vm892, %v872
      %938 = vst.msk [vmem:[%s172 + $0x168] sm:$0xff] %vm892, %v873
      %939 = vst.msk [vmem:[%s172 + $0x170] sm:$0xff] %vm892, %v874
      %940 = vst.msk [vmem:[%s172 + $0x178] sm:$0xff] %vm892, %v875
      %941 = vst.msk [vmem:[%s172 + $0x180] sm:$0xff] %vm892, %v876
      %942 = vst.msk [vmem:[%s172 + $0x188] sm:$0xff] %vm892, %v877
      %943 = vst.msk [vmem:[%s172 + $0x190] sm:$0xff] %vm892, %v878
      %944 = vst.msk [vmem:[%s172 + $0x198] sm:$0xff] %vm892, %v879
      %945 = vst.msk [vmem:[%s172 + $0x1a0] sm:$0xff] %vm892, %v880
      %946 = vst.msk [vmem:[%s172 + $0x1a8] sm:$0xff] %vm892, %v881
      %947 = vst.msk [vmem:[%s172 + $0x1b0] sm:$0xff] %vm892, %v882
      %948 = vst.msk [vmem:[%s172 + $0x1b8] sm:$0xff] %vm892, %v883
      %949 = vst.msk [vmem:[%s172 + $0x1c0] sm:$0xff] %vm892, %v884
      %950 = vst.msk [vmem:[%s172 + $0x1c8] sm:$0xff] %vm892, %v885
      %951 = vst.msk [vmem:[%s172 + $0x1d0] sm:$0xff] %vm892, %v886
      %952 = vst.msk [vmem:[%s172 + $0x1d8] sm:$0xff] %vm892, %v887
      %953 = vst.msk [vmem:[%s172 + $0x1e0] sm:$0xff] %vm892, %v888
      %954 = vst.msk [vmem:[%s172 + $0x1e8] sm:$0xff] %vm892, %v889
      %955 = vst.msk [vmem:[%s172 + $0x1f0] sm:$0xff] %vm892, %v890
      %956 = vst.msk [vmem:[%s172 + $0x1f8] sm:$0xff] %vm892, %v891
      %s957 = smul.u32 64, %s14
      %p958 = scmp.lt.s32.totalorder %s957, 191
      %s959 = scalar_select %p958, %s957, 191
      %s960 = smul.addr %s959, 8
      %s961 = scalar_lea.vmem %s3, %s960
      // Predicated region
      $region33: #{tpu_custom_call.1} parent=31 // pred_check
        %p962 = pneg %p100
      $region34: #{tpu_custom_call.1} parent=31 // pred_check_branch
        %964 = sbr.rel (%p962) target = $region36
      $region35: #{tpu_custom_call.1} parent=31 // pred_region
        %s965 = smul.u32 64, %s14
      $region36: #{tpu_custom_call.1} parent=31 // pred_fallthru
        _
    $region32: #{tpu_custom_call.1} parent=5 // pred_fallthru
      _
    %p966 = scmp.le.s32.totalorder 2, %s9
    // Predicated region
    $region37: #{tpu_custom_call.1} parent=5 // pred_check
      %p967 = pneg %p966
    $region38: #{tpu_custom_call.1} parent=5 // pred_check_branch
      %969 = sbr.rel (%p967) target = $region40
    $region39: #{tpu_custom_call.1} parent=5 // pred_region
      %s970 = ssub.s32 %s9, 2
      // Predicated region
      $region41: #{tpu_custom_call.1} parent=39 // pred_check
        %p971 = pneg %p106
      $region42: #{tpu_custom_call.1} parent=39 // pred_check_branch
        %973 = sbr.rel (%p971) target = $region44
      $region43: #{tpu_custom_call.1} parent=39 // pred_region
        %s974 = smul.u32 64, %s15
        %p975 = scmp.lt.s32.totalorder %s974, 191
        %s976 = scalar_select %p975, %s974, 191
        %s977 = smul.addr %s976, 8
        %s978 = scalar_lea.vmem %s3, %s977
      $region44: #{tpu_custom_call.1} parent=39 // pred_fallthru
        _
    $region40: #{tpu_custom_call.1} parent=5 // pred_fallthru
      _
  $region6: #{tpu_custom_call.1} parent=0 // loop_footer
    %s13 = sadd.s32 1, %s9
  $region7: #{tpu_custom_call.1} parent=0 // loop_footer_branch
    %8 = sbr.rel target = $region3
  $region8: #{tpu_custom_call.1} parent=0 // loop_exit
    _

</llo_original>
